<compile_context>
chip_gen: v6e
topology: v6e:2x2x1
jax: 0.10.0
libtpu: 0.0.40
codegen_flags: <defaults>
</compile_context>

<pallas_src>
import functools

import jax
import jax.numpy as jnp
from jax.experimental import pallas as pl
from jax.experimental.pallas import tpu as pltpu


# -----------------------------------------------------------------------------
# Pallas kernel
# -----------------------------------------------------------------------------
def _conv_lstm_cell_kernel(x_ref, c_ref, w_ref, b_ref, h_out, c_out, *,
                           out_channels):
    """One batch element per grid step.

    x_ref : (1, 9*Cin, HW)   bf16  -- im2col'd input (tap-major, cin-minor rows)
    c_ref : (1, Cout, HW)    f32   -- previous cell state
    w_ref : (4*Cout, 9*Cin)  bf16  -- fused gate weights (forget|input|output|state)
    b_ref : (4*Cout, 1)      f32   -- fused gate biases
    h_out : (1, Cout, HW)          -- new hidden state
    c_out : (1, Cout, HW)          -- new cell state
    """
    co = out_channels

    # Single fused conv-as-GEMM for all 4 gates: K = 9*Cin on the MXU,
    # f32 accumulation. Result is (4*Cout, HW) with HW on lanes.
    acc = jnp.dot(w_ref[...], x_ref[0], preferred_element_type=jnp.float32)
    acc = acc + b_ref[...]  # (4*Cout, 1) splat-broadcast over the lane (HW) axis

    # Gate slices land on clean 8-row f32 sublane boundaries (Cout = 8).
    forget_gate = jax.nn.sigmoid(acc[0 * co:1 * co, :])
    input_gate = jax.nn.sigmoid(acc[1 * co:2 * co, :])
    output_gate = jax.nn.sigmoid(acc[2 * co:3 * co, :])
    state_gate = jnp.tanh(acc[3 * co:4 * co, :])

    cell = forget_gate * c_ref[0] + input_gate * state_gate
    hidden = output_gate * jnp.tanh(cell)

    c_out[0] = cell.astype(c_out.dtype)
    h_out[0] = hidden.astype(h_out.dtype)


# -----------------------------------------------------------------------------
# Wrapper (layout glue: padding, im2col, weight fusion)
# -----------------------------------------------------------------------------
GATE_NAMES = ("forget", "input", "output", "state")


def conv2d_lstm_cell(x, states, params):
    """Forward pass equivalent to Conv2dLSTMCell.forward.

    x      : (B, Cin, H, W)  NCHW, like PyTorch
    states : (hidden, cell), each (B, Cout, H, W)
    params : dict with '<gate>_w' (Cout, Cin, 3, 3) and '<gate>_b' (Cout,)
    returns (hidden, cell), each (B, Cout, H, W)
    """
    hidden, cell = states  # NOTE: `hidden` is not read by the PyTorch forward.
    del hidden
    B, Cin, H, W = x.shape
    Cout = cell.shape[1]
    HW = H * W
    K = 9 * Cin

    # ---- glue: im2col once, channel-major, spatial flattened on the last axis.
    # x_col[b, t*Cin + cin, y*W + x] = x_pad[b, cin, y+dy, x+dx], t = dy*3 + dx.
    x_pad = jnp.pad(x, ((0, 0), (0, 0), (1, 1), (1, 1)))  # (B, Cin, H+2, W+2)
    taps = []
    for dy in range(3):
        for dx in range(3):
            taps.append(x_pad[:, :, dy:dy + H, dx:dx + W].reshape(B, Cin, HW))
    x_col = jnp.concatenate(taps, axis=1).astype(jnp.bfloat16)  # (B, 9*Cin, HW)
    # (im2col in-wrapper is cheap at these sizes; in-kernel tap generation via
    #  pl.ds/pltpu.roll would only pay off at much larger Cin*H*W.)

    # Cell state stays in f32 and is already flattened NCHW -> (B, Cout, HW).
    c_flat = cell.reshape(B, Cout, HW)

    # ---- glue: fuse the 4 gate conv weights into (4*Cout, 9*Cin), bf16.
    # Column index = (dy*3 + dx)*Cin + cin, matching x_col's row layout.
    ws, bs = [], []
    for name in GATE_NAMES:
        w = params[name + "_w"]                    # (Cout, Cin, 3, 3)  OIHW
        ws.append(jnp.transpose(w, (0, 2, 3, 1)).reshape(Cout, K))
        bs.append(params[name + "_b"])
    w_fused = jnp.concatenate(ws, axis=0).astype(jnp.bfloat16)  # (4*Cout, 9*Cin)
    b_fused = jnp.concatenate(bs).reshape(4 * Cout, 1)          # (4*Cout, 1) f32

    kernel = functools.partial(_conv_lstm_cell_kernel, out_channels=Cout)

    h_new, c_new = pl.pallas_call(
        kernel,
        out_shape=(jax.ShapeDtypeStruct((B, Cout, HW), x.dtype),
                   jax.ShapeDtypeStruct((B, Cout, HW), x.dtype)),
        grid=(B,),
        in_specs=[
            pl.BlockSpec((1, K, HW), lambda b: (b, 0, 0)),        # im2col'd x
            pl.BlockSpec((1, Cout, HW), lambda b: (b, 0, 0)),     # prev cell
            pl.BlockSpec((4 * Cout, K), lambda b: (0, 0)),        # fused weights
            pl.BlockSpec((4 * Cout, 1), lambda b: (0, 0)),        # fused biases
        ],
        out_specs=(
            pl.BlockSpec((1, Cout, HW), lambda b: (b, 0, 0)),     # hidden
            pl.BlockSpec((1, Cout, HW), lambda b: (b, 0, 0)),     # cell
        ),
        # Reuse the previous-cell HBM buffer for the new cell state.
        input_output_aliases={1: 1},
        compiler_params=pltpu.CompilerParams(
            dimension_semantics=("parallel",)),
    )(x_col, c_flat, w_fused, b_fused)

    # ---- glue: (B, Cout, HW) is flattened NCHW, so this is a pure reshape.
    return h_new.reshape(B, Cout, H, W), c_new.reshape(B, Cout, H, W)


# -----------------------------------------------------------------------------
# Pure-JAX reference (for correctness check)
# -----------------------------------------------------------------------------
def conv2d_lstm_cell_ref(x, states, params):
    hidden, cell = states
    del hidden

    def conv(w, b):
        y = jax.lax.conv_general_dilated(
            x, w, window_strides=(1, 1), padding=((1, 1), (1, 1)),
            dimension_numbers=("NCHW", "OIHW", "NCHW"))
        return y + b[None, :, None, None]

    f = jax.nn.sigmoid(conv(params["forget_w"], params["forget_b"]))
    i = jax.nn.sigmoid(conv(params["input_w"], params["input_b"]))
    o = jax.nn.sigmoid(conv(params["output_w"], params["output_b"]))
    g = jnp.tanh(conv(params["state_w"], params["state_b"]))
    cell = f * cell + i * g
    hidden = o * jnp.tanh(cell)
    return hidden, cell


# -----------------------------------------------------------------------------
# Deterministic parameter init (PyTorch Conv2d-style uniform(-k, k), k=1/sqrt(fan_in))
# -----------------------------------------------------------------------------
def init_params(key, in_channels, out_channels, kernel_size=3):
    fan_in = in_channels * kernel_size * kernel_size
    k = 1.0 / jnp.sqrt(jnp.float32(fan_in))
    params = {}
    keys = jax.random.split(key, 2 * len(GATE_NAMES))
    for idx, name in enumerate(GATE_NAMES):
        wk, bk = keys[2 * idx], keys[2 * idx + 1]
        params[name + "_w"] = jax.random.uniform(
            wk, (out_channels, in_channels, kernel_size, kernel_size),
            jnp.float32, minval=-k, maxval=k)
        params[name + "_b"] = jax.random.uniform(
            bk, (out_channels,), jnp.float32, minval=-k, maxval=k)
    return params


# -----------------------------------------------------------------------------
# Main
# -----------------------------------------------------------------------------
if __name__ == "__main__":
    B, Cin, Cout, H, W = 2, 4, 8, 16, 16

    root = jax.random.PRNGKey(0)
    kx, kh, kc, kp = jax.random.split(root, 4)

    x = jax.random.normal(kx, (B, Cin, H, W), jnp.float32)
    hidden0 = jax.random.normal(kh, (B, Cout, H, W), jnp.float32)
    cell0 = jax.random.normal(kc, (B, Cout, H, W), jnp.float32)
    params = init_params(kp, Cin, Cout)

    fwd = jax.jit(conv2d_lstm_cell)
    h_pal, c_pal = fwd(x, (hidden0, cell0), params)
    jax.block_until_ready((h_pal, c_pal))

    h_ref, c_ref = conv2d_lstm_cell_ref(x, (hidden0, cell0), params)

    assert h_pal.shape == (B, Cout, H, W) and c_pal.shape == (B, Cout, H, W)
    # Tolerance relaxed vs the f32 reference because matmul operands are bf16
    # (f32 MXU accumulation keeps the recurrence stable).
    assert jnp.allclose(h_pal, h_ref, atol=3e-2, rtol=3e-2), "hidden mismatch"
    assert jnp.allclose(c_pal, c_ref, atol=3e-2, rtol=3e-2), "cell mismatch"

    print("KERNEL_OK")
</pallas_src>

<mosaic_0001>
module attributes {stable_mosaic.version = 11 : i64} {
  func.func @_conv_lstm_cell_kernel(%arg0: i32, %arg1: memref<1x36x256xbf16, #tpu.memory_space<vmem>>, %arg2: memref<1x8x256xf32, #tpu.memory_space<vmem>>, %arg3: memref<32x36xbf16, #tpu.memory_space<vmem>>, %arg4: memref<32x1xf32, #tpu.memory_space<vmem>>, %arg5: memref<1x8x256xf32, #tpu.memory_space<vmem>>, %arg6: memref<1x8x256xf32, #tpu.memory_space<vmem>>) attributes {dimension_semantics = [#tpu.dimension_semantics<parallel>], iteration_bounds = array<i64: 2>, scalar_prefetch = 0 : i64, scratch_operands = 0 : i64, tpu.core_type = #tpu.core_type<tc>, window_params = [{transform_indices = @transform_0, window_bounds = array<i64: 1, 36, 256>}, {transform_indices = @transform_1, window_bounds = array<i64: 1, 8, 256>}, {pipeline_mode = #tpu.pipeline_mode<synchronous>, transform_indices = @transform_2, window_bounds = array<i64: 32, 36>}, {pipeline_mode = #tpu.pipeline_mode<synchronous>, transform_indices = @transform_3, window_bounds = array<i64: 32, 1>}, {transform_indices = @transform_4, window_bounds = array<i64: 1, 8, 256>}, {transform_indices = @transform_5, window_bounds = array<i64: 1, 8, 256>}]} {
    %c0 = arith.constant 0 : index
    %c0_0 = arith.constant 0 : index
    %0 = vector.load %arg3[%c0, %c0_0] : memref<32x36xbf16, #tpu.memory_space<vmem>>, vector<32x36xbf16>
    %c0_1 = arith.constant 0 : index
    %c0_2 = arith.constant 0 : index
    %c0_3 = arith.constant 0 : index
    %1 = vector.load %arg1[%c0_1, %c0_2, %c0_3] : memref<1x36x256xbf16, #tpu.memory_space<vmem>>, vector<1x36x256xbf16>
    %2 = vector.shape_cast %1 : vector<1x36x256xbf16> to vector<36x256xbf16>
    %cst = arith.constant dense<0.000000e+00> : vector<32x256xf32>
    %3 = tpu.matmul %0, %2, %cst {dimension_numbers = #tpu.dot_dimension_numbers<[1], [0], [0], [1], [0, 0, 1, 1], [], []>} : vector<32x36xbf16>, vector<36x256xbf16>, vector<32x256xf32> -> vector<32x256xf32>
    %c0_4 = arith.constant 0 : index
    %c0_5 = arith.constant 0 : index
    %4 = vector.load %arg4[%c0_4, %c0_5] : memref<32x1xf32, #tpu.memory_space<vmem>>, vector<32x1xf32>
    %5 = vector.broadcast %4 : vector<32x1xf32> to vector<32x256xf32>
    %6 = arith.addf %3, %5 : vector<32x256xf32>
    %7 = vector.extract_strided_slice %6 {offsets = [0, 0], sizes = [8, 256], strides = [1, 1]} : vector<32x256xf32> to vector<8x256xf32>
    %8 = arith.negf %7 : vector<8x256xf32>
    %9 = math.exp %8 : vector<8x256xf32>
    %cst_6 = arith.constant 1.000000e+00 : f32
    %10 = vector.broadcast %cst_6 : f32 to vector<8x256xf32>
    %11 = arith.addf %10, %9 : vector<8x256xf32>
    %12 = arith.divf %10, %11 : vector<8x256xf32>
    %13 = vector.extract_strided_slice %6 {offsets = [8, 0], sizes = [8, 256], strides = [1, 1]} : vector<32x256xf32> to vector<8x256xf32>
    %14 = arith.negf %13 : vector<8x256xf32>
    %15 = math.exp %14 : vector<8x256xf32>
    %cst_7 = arith.constant 1.000000e+00 : f32
    %16 = vector.broadcast %cst_7 : f32 to vector<8x256xf32>
    %17 = arith.addf %16, %15 : vector<8x256xf32>
    %18 = arith.divf %16, %17 : vector<8x256xf32>
    %19 = vector.extract_strided_slice %6 {offsets = [16, 0], sizes = [8, 256], strides = [1, 1]} : vector<32x256xf32> to vector<8x256xf32>
    %20 = arith.negf %19 : vector<8x256xf32>
    %21 = math.exp %20 : vector<8x256xf32>
    %cst_8 = arith.constant 1.000000e+00 : f32
    %22 = vector.broadcast %cst_8 : f32 to vector<8x256xf32>
    %23 = arith.addf %22, %21 : vector<8x256xf32>
    %24 = arith.divf %22, %23 : vector<8x256xf32>
    %25 = vector.extract_strided_slice %6 {offsets = [24, 0], sizes = [8, 256], strides = [1, 1]} : vector<32x256xf32> to vector<8x256xf32>
    %26 = math.tanh %25 : vector<8x256xf32>
    %c0_9 = arith.constant 0 : index
    %c0_10 = arith.constant 0 : index
    %c0_11 = arith.constant 0 : index
    %27 = vector.load %arg2[%c0_9, %c0_10, %c0_11] : memref<1x8x256xf32, #tpu.memory_space<vmem>>, vector<1x8x256xf32>
    %28 = vector.shape_cast %27 : vector<1x8x256xf32> to vector<8x256xf32>
    %29 = arith.mulf %12, %28 : vector<8x256xf32>
    %30 = arith.mulf %18, %26 : vector<8x256xf32>
    %31 = arith.addf %29, %30 : vector<8x256xf32>
    %32 = math.tanh %31 : vector<8x256xf32>
    %33 = arith.mulf %24, %32 : vector<8x256xf32>
    %c0_12 = arith.constant 0 : index
    %c0_13 = arith.constant 0 : index
    %c0_14 = arith.constant 0 : index
    %34 = vector.load %arg6[%c0_12, %c0_13, %c0_14] : memref<1x8x256xf32, #tpu.memory_space<vmem>>, vector<1x8x256xf32>
    %35 = vector.shape_cast %34 : vector<1x8x256xf32> to vector<8x256xf32>
    %36 = vector.shape_cast %31 : vector<8x256xf32> to vector<1x8x256xf32>
    tpu.vector_store %arg6[%c0_12, %c0_13, %c0_14], %36 {strides = array<i32>} : memref<1x8x256xf32, #tpu.memory_space<vmem>>, vector<1x8x256xf32>,
    %c0_15 = arith.constant 0 : index
    %c0_16 = arith.constant 0 : index
    %c0_17 = arith.constant 0 : index
    %37 = vector.load %arg5[%c0_15, %c0_16, %c0_17] : memref<1x8x256xf32, #tpu.memory_space<vmem>>, vector<1x8x256xf32>
    %38 = vector.shape_cast %37 : vector<1x8x256xf32> to vector<8x256xf32>
    %39 = vector.shape_cast %33 : vector<8x256xf32> to vector<1x8x256xf32>
    tpu.vector_store %arg5[%c0_15, %c0_16, %c0_17], %39 {strides = array<i32>} : memref<1x8x256xf32, #tpu.memory_space<vmem>>, vector<1x8x256xf32>,
    return
  }
  func.func @transform_0(%arg0: i32) -> (i32, i32, i32) {
    %c0_i32 = arith.constant 0 : i32
    %c0_i32_0 = arith.constant 0 : i32
    %c0_i32_1 = arith.constant 0 : i32
    return %arg0, %c0_i32, %c0_i32_0 : i32, i32, i32
  }
  func.func @transform_1(%arg0: i32) -> (i32, i32, i32) {
    %c0_i32 = arith.constant 0 : i32
    %c0_i32_0 = arith.constant 0 : i32
    %c0_i32_1 = arith.constant 0 : i32
    return %arg0, %c0_i32, %c0_i32_0 : i32, i32, i32
  }
  func.func @transform_2(%arg0: i32) -> (i32, i32) {
    %c0_i32 = arith.constant 0 : i32
    %c0_i32_0 = arith.constant 0 : i32
    %c0_i32_1 = arith.constant 0 : i32
    return %c0_i32, %c0_i32_0 : i32, i32
  }
  func.func @transform_3(%arg0: i32) -> (i32, i32) {
    %c0_i32 = arith.constant 0 : i32
    %c0_i32_0 = arith.constant 0 : i32
    %c0_i32_1 = arith.constant 0 : i32
    return %c0_i32, %c0_i32_0 : i32, i32
  }
  func.func @transform_4(%arg0: i32) -> (i32, i32, i32) {
    %c0_i32 = arith.constant 0 : i32
    %c0_i32_0 = arith.constant 0 : i32
    %c0_i32_1 = arith.constant 0 : i32
    return %arg0, %c0_i32, %c0_i32_0 : i32, i32, i32
  }
  func.func @transform_5(%arg0: i32) -> (i32, i32, i32) {
    %c0_i32 = arith.constant 0 : i32
    %c0_i32_0 = arith.constant 0 : i32
    %c0_i32_1 = arith.constant 0 : i32
    return %arg0, %c0_i32, %c0_i32_0 : i32, i32, i32
  }
}

</mosaic_0001>

<llo_original>
// kernel: conv2d_lstm_cell.1
$region0: #{conv2d_lstm_cell.1}
  #allocation0 [shape = 'u32[]', space=smem, size = 0x4, offset = 0x4, fixed_abs, tag = 'smem constant byte address 0x4 - core index']
  #allocation1 [shape = 'u32[144,128]{1,0:T(1,128)}', space=vmem, size = 0x12000, scoped, tag = 'internal scratch']
  %s0 = inlined_call_operand.vmem [shape: bf16[2,36,256], index: 0, kind: input, shape index: {}]
  %s1 = inlined_call_operand.vmem [shape: f32[2,8,256], index: 1, kind: input, shape index: {}, may-alias: {1,5}]
  %s2 = inlined_call_operand.vmem [shape: bf16[32,36], index: 2, kind: input, shape index: {}]
  %s3 = inlined_call_operand.vmem [shape: f32[32,1], index: 3, kind: input, shape index: {}]
  %s4 = inlined_call_operand.vmem [shape: f32[2,8,256], index: 4, kind: output, shape index: {0}]
  %s5 = inlined_call_operand.vmem [shape: f32[2,8,256], index: 5, kind: output, shape index: {1}, may-alias: {1,5}]
  %6 = xla_tuple %s4, %s5
  %s7 = sld [smem:[#allocation0]]
  $region57: #{conv2d_lstm_cell.1} parent=0
    _
  %s9 = ssub.s32 1, %s7
  %s10 = scalar_select 0, %s9, %s7
  loop: start=0, step=1, limit=4
  $region2: #{conv2d_lstm_cell.1} parent=0 // loop_pre_header
    _
  $region3: #{conv2d_lstm_cell.1} parent=0 // loop_header
    %s12 = sphi 0, %s16
    %p13 = scmp.ge.s32.totalorder %s12, 4
    %s22 = sphi 0, %s24
    %s25 = sphi 0, %s22
    %s26 = sphi 0, %s25
    %s42 = sphi 0, %s26
    %s48 = sphi 0, %s50
    %s51 = sphi 0, %s48
    %s52 = sphi 0, %s51
    %s68 = sphi 0, %s52
    %s72 = sphi 0, %s72
    %s74 = sphi 0, %s72
    %s75 = sphi 0, %s74
    %s89 = sphi 0, %s75
    %s93 = sphi 0, %s93
    %s95 = sphi 0, %s93
    %s96 = sphi 0, %s95
    %s110 = sphi 0, %s96
    %s116 = sphi 0, %s118
    %s119 = sphi 0, %s116
    %s120 = sphi 0, %s119
    %s136 = sphi 0, %s120
    %s142 = sphi 0, %s144
    %s145 = sphi 0, %s142
    %s146 = sphi 0, %s145
    %s162 = sphi 0, %s146
  $region4: #{conv2d_lstm_cell.1} parent=0 // loop_header_branch
    %15 = sbr.rel (%p13) target = $region8
  $region5: #{conv2d_lstm_cell.1} parent=0 // loop_body
    %s17 = ssub.s32 %s12, 1
    %s18 = ssub.s32 %s12, 2
    %s19 = sadd.s32 %s12, 1
    %s20 = ssub.s32 %s12, %s19
    %p21 = scmp.eq.s32.totalorder %s20, 0
    %s23 = sadd.s32 %s22, 1
    %s24 = scalar_select %p21, %s22, %s23
    %p27 = pneg %p21
    %p28 = scmp.eq.s32.totalorder %s12, 1
    %p29 = por %p27, %p28
    %p30 = scmp.ne.s32.totalorder %s22, %s25
    %p31 = scmp.eq.s32.totalorder %s12, 0
    %p32 = por %p30, %p31
    %p33 = scmp.ne.s32.totalorder %s22, %s25
    %p34 = scmp.eq.s32.totalorder %s17, 1
    %p35 = por %p33, %p34
    %p36 = scmp.ne.s32.totalorder %s25, %s26
    %p37 = scmp.eq.s32.totalorder %s17, 0
    %p38 = por %p36, %p37
    %p39 = scmp.ne.s32.totalorder %s25, %s26
    %p40 = scmp.eq.s32.totalorder %s18, 1
    %p41 = por %p39, %p40
    %p43 = scmp.ne.s32.totalorder %s26, %s42
    %p44 = scmp.eq.s32.totalorder %s18, 0
    %p45 = por %p43, %p44
    %s46 = ssub.s32 %s12, %s19
    %p47 = scmp.eq.s32.totalorder %s46, 0
    %s49 = sadd.s32 %s48, 1
    %s50 = scalar_select %p47, %s48, %s49
    %p53 = pneg %p47
    %p54 = scmp.eq.s32.totalorder %s12, 1
    %p55 = por %p53, %p54
    %p56 = scmp.ne.s32.totalorder %s48, %s51
    %p57 = scmp.eq.s32.totalorder %s12, 0
    %p58 = por %p56, %p57
    %p59 = scmp.ne.s32.totalorder %s48, %s51
    %p60 = scmp.eq.s32.totalorder %s17, 1
    %p61 = por %p59, %p60
    %p62 = scmp.ne.s32.totalorder %s51, %s52
    %p63 = scmp.eq.s32.totalorder %s17, 0
    %p64 = por %p62, %p63
    %p65 = scmp.ne.s32.totalorder %s51, %s52
    %p66 = scmp.eq.s32.totalorder %s18, 1
    %p67 = por %p65, %p66
    %p69 = scmp.ne.s32.totalorder %s52, %s68
    %p70 = scmp.eq.s32.totalorder %s18, 0
    %p71 = por %p69, %p70
    %s73 = sadd.s32 %s72, 1
    %p76 = scmp.eq.s32.totalorder %s12, 1
    %p77 = scmp.ne.s32.totalorder %s72, %s74
    %p78 = scmp.eq.s32.totalorder %s12, 0
    %p79 = por %p77, %p78
    %p80 = scmp.ne.s32.totalorder %s72, %s74
    %p81 = scmp.eq.s32.totalorder %s17, 1
    %p82 = por %p80, %p81
    %p83 = scmp.ne.s32.totalorder %s74, %s75
    %p84 = scmp.eq.s32.totalorder %s17, 0
    %p85 = por %p83, %p84
    %p86 = scmp.ne.s32.totalorder %s74, %s75
    %p87 = scmp.eq.s32.totalorder %s18, 1
    %p88 = por %p86, %p87
    %p90 = scmp.ne.s32.totalorder %s75, %s89
    %p91 = scmp.eq.s32.totalorder %s18, 0
    %p92 = por %p90, %p91
    %s94 = sadd.s32 %s93, 1
    %p97 = scmp.eq.s32.totalorder %s12, 1
    %p98 = scmp.ne.s32.totalorder %s93, %s95
    %p99 = scmp.eq.s32.totalorder %s12, 0
    %p100 = por %p98, %p99
    %p101 = scmp.ne.s32.totalorder %s93, %s95
    %p102 = scmp.eq.s32.totalorder %s17, 1
    %p103 = por %p101, %p102
    %p104 = scmp.ne.s32.totalorder %s95, %s96
    %p105 = scmp.eq.s32.totalorder %s17, 0
    %p106 = por %p104, %p105
    %p107 = scmp.ne.s32.totalorder %s95, %s96
    %p108 = scmp.eq.s32.totalorder %s18, 1
    %p109 = por %p107, %p108
    %p111 = scmp.ne.s32.totalorder %s96, %s110
    %p112 = scmp.eq.s32.totalorder %s18, 0
    %p113 = por %p111, %p112
    %s114 = ssub.s32 %s12, %s19
    %p115 = scmp.eq.s32.totalorder %s114, 0
    %s117 = sadd.s32 %s116, 1
    %s118 = scalar_select %p115, %s116, %s117
    %p121 = pneg %p115
    %p122 = scmp.eq.s32.totalorder %s12, 1
    %p123 = por %p121, %p122
    %p124 = scmp.ne.s32.totalorder %s116, %s119
    %p125 = scmp.eq.s32.totalorder %s12, 0
    %p126 = por %p124, %p125
    %p127 = scmp.ne.s32.totalorder %s116, %s119
    %p128 = scmp.eq.s32.totalorder %s17, 1
    %p129 = por %p127, %p128
    %p130 = scmp.ne.s32.totalorder %s119, %s120
    %p131 = scmp.eq.s32.totalorder %s17, 0
    %p132 = por %p130, %p131
    %p133 = scmp.ne.s32.totalorder %s119, %s120
    %p134 = scmp.eq.s32.totalorder %s18, 1
    %p135 = por %p133, %p134
    %p137 = scmp.ne.s32.totalorder %s120, %s136
    %p138 = scmp.eq.s32.totalorder %s18, 0
    %p139 = por %p137, %p138
    %s140 = ssub.s32 %s12, %s19
    %p141 = scmp.eq.s32.totalorder %s140, 0
    %s143 = sadd.s32 %s142, 1
    %s144 = scalar_select %p141, %s142, %s143
    %p147 = pneg %p141
    %p148 = scmp.eq.s32.totalorder %s12, 1
    %p149 = por %p147, %p148
    %p150 = scmp.ne.s32.totalorder %s142, %s145
    %p151 = scmp.eq.s32.totalorder %s12, 0
    %p152 = por %p150, %p151
    %p153 = scmp.ne.s32.totalorder %s142, %s145
    %p154 = scmp.eq.s32.totalorder %s17, 1
    %p155 = por %p153, %p154
    %p156 = scmp.ne.s32.totalorder %s145, %s146
    %p157 = scmp.eq.s32.totalorder %s17, 0
    %p158 = por %p156, %p157
    %p159 = scmp.ne.s32.totalorder %s145, %s146
    %p160 = scmp.eq.s32.totalorder %s18, 1
    %p161 = por %p159, %p160
    %p163 = scmp.ne.s32.totalorder %s146, %s162
    %p164 = scmp.eq.s32.totalorder %s18, 0
    %p165 = por %p163, %p164
    %p166 = scmp.le.s32.totalorder 1, %s12
    %p167 = scmp.lt.s32.totalorder %s12, 3
    %p168 = pnand %p166, %p167
    %p169 = pneg %p168
    // Predicated region
    $region9: #{conv2d_lstm_cell.1} parent=5 // pred_check
      _
    $region10: #{conv2d_lstm_cell.1} parent=5 // pred_check_branch
      %171 = sbr.rel (%p168) target = $region12
    $region11: #{conv2d_lstm_cell.1} parent=5 // pred_region
      %s172 = ssub.s32 %s12, 1
      // Predicated region
      $region13: #{conv2d_lstm_cell.1} parent=11 // pred_check
        %p173 = pneg %p85
      $region14: #{conv2d_lstm_cell.1} parent=11 // pred_check_branch
        %175 = sbr.rel (%p173) target = $region16
      $region15: #{conv2d_lstm_cell.1} parent=11 // pred_region
        _
      $region16: #{conv2d_lstm_cell.1} parent=11 // pred_fallthru
        _
      // Predicated region
      $region17: #{conv2d_lstm_cell.1} parent=11 // pred_check
        %p176 = pneg %p106
      $region18: #{conv2d_lstm_cell.1} parent=11 // pred_check_branch
        %178 = sbr.rel (%p176) target = $region20
      $region19: #{conv2d_lstm_cell.1} parent=11 // pred_region
        _
      $region20: #{conv2d_lstm_cell.1} parent=11 // pred_fallthru
        _
    $region12: #{conv2d_lstm_cell.1} parent=5 // pred_fallthru
      _
    %p179 = scmp.lt.s32.totalorder %s12, 2
    // Predicated region
    $region21: #{conv2d_lstm_cell.1} parent=5 // pred_check
      %p180 = pneg %p179
    $region22: #{conv2d_lstm_cell.1} parent=5 // pred_check_branch
      %182 = sbr.rel (%p180) target = $region24
    $region23: #{conv2d_lstm_cell.1} parent=5 // pred_region
      // Predicated region
      $region25: #{conv2d_lstm_cell.1} parent=23 // pred_check
        %p183 = pneg %p32
      $region26: #{conv2d_lstm_cell.1} parent=23 // pred_check_branch
        %185 = sbr.rel (%p183) target = $region28
      $region27: #{conv2d_lstm_cell.1} parent=23 // pred_region
        %p186 = scmp.lt.s32.totalorder %s12, 1
        %s187 = scalar_select %p186, %s12, 1
        %s188 = smul.addr %s187, 10
        %s189 = smul.addr %s188, 4
        %s190 = scalar_lea.vmem %s0, %s189
      $region28: #{conv2d_lstm_cell.1} parent=23 // pred_fallthru
        _
      // Predicated region
      $region29: #{conv2d_lstm_cell.1} parent=23 // pred_check
        %p191 = pneg %p58
      $region30: #{conv2d_lstm_cell.1} parent=23 // pred_check_branch
        %193 = sbr.rel (%p191) target = $region32
      $region31: #{conv2d_lstm_cell.1} parent=23 // pred_region
        %p194 = scmp.lt.s32.totalorder %s12, 1
        %s195 = scalar_select %p194, %s12, 1
        %s196 = smul.addr %s195, 2
        %s197 = smul.addr %s196, 8
        %s198 = scalar_lea.vmem %s1, %s197
      $region32: #{conv2d_lstm_cell.1} parent=23 // pred_fallthru
        _
    $region24: #{conv2d_lstm_cell.1} parent=5 // pred_fallthru
      _
    %p199 = scmp.le.s32.totalorder 1, %s12
    %p200 = scmp.lt.s32.totalorder %s12, 3
    %p201 = pnand %p199, %p200
    %p202 = pneg %p201
    // Predicated region
    $region33: #{conv2d_lstm_cell.1} parent=5 // pred_check
      _
    $region34: #{conv2d_lstm_cell.1} parent=5 // pred_check_branch
      %204 = sbr.rel (%p201) target = $region36
    $region35: #{conv2d_lstm_cell.1} parent=5 // pred_region
      %s205 = ssub.s32 %s12, 1
      %p206 = scmp.lt.s32.totalorder %s17, 1
      %s207 = scalar_select %p206, %s17, 1
      %s208 = smul.addr %s207, 10
      %s209 = smul.addr %s208, 4
      %s210 = scalar_lea.vmem %s0, %s209
      %p211 = pneg %p38
      %p212 = pneg %p35
      %p213 = scmp.lt.s32.totalorder %s17, 1
      %s214 = scalar_select %p213, %s17, 1
      %s215 = smul.addr %s214, 2
      %s216 = smul.addr %s215, 8
      %s217 = scalar_lea.vmem %s1, %s216
      %p218 = pneg %p64
      %p219 = pneg %p61
      %p220 = pneg %p85
      %p221 = pneg %p82
      %p222 = pneg %p106
      %p223 = pneg %p103
      %p224 = pneg %p132
      %p225 = pneg %p129
      %p226 = scmp.lt.s32.totalorder %s17, 1
      %s227 = scalar_select %p226, %s17, 1
      %s228 = smul.addr %s227, 2
      %s229 = smul.addr %s228, 8
      %s230 = scalar_lea.vmem %s4, %s229
      %p231 = pneg %p158
      %p232 = pneg %p155
      %p233 = scmp.lt.s32.totalorder %s17, 1
      %s234 = scalar_select %p233, %s17, 1
      %s235 = smul.addr %s234, 2
      %s236 = smul.addr %s235, 8
      %s237 = scalar_lea.vmem %s5, %s236
      %p238 = scmp.lt.s32.totalorder %s17, 1
      %s239 = scalar_select %p238, %s17, 1
      %s240 = smul.addr %s239, 10
      %s241 = smul.addr %s240, 4
      %s242 = scalar_lea.vmem %s0, %s241
      %p243 = scmp.lt.s32.totalorder %s17, 1
      %s244 = scalar_select %p243, %s17, 1
      %s245 = smul.addr %s244, 2
      %s246 = smul.addr %s245, 8
      %s247 = scalar_lea.vmem %s1, %s246
      %p248 = scmp.lt.s32.totalorder %s17, 1
      %s249 = scalar_select %p248, %s17, 1
      %s250 = smul.addr %s249, 2
      %s251 = smul.addr %s250, 8
      %s252 = scalar_lea.vmem %s4, %s251
      %p253 = scmp.lt.s32.totalorder %s17, 1
      %s254 = scalar_select %p253, %s17, 1
      %s255 = smul.addr %s254, 2
      %s256 = smul.addr %s255, 8
      %s257 = scalar_lea.vmem %s5, %s256
      %v259 = vld [vmem:[%s2] sm:$0xf]
      %v260 = vld [vmem:[%s2 + $0x4] sm:$0xf]
      %v261 = vld [vmem:[%s2 + $0x8] sm:$0xf]
      %v262 = vld [vmem:[%s2 + $0xc] sm:$0xf]
      %v263 = vld [vmem:[%s242] sm:$0xff]
      %v264 = vld [vmem:[%s242 + $0x8] sm:$0xff]
      %v265 = vld [vmem:[%s242 + $0x10] sm:$0xff]
      %v266 = vld [vmem:[%s242 + $0x18] sm:$0xff]
      %v267 = vld [vmem:[%s242 + $0x20] sm:$0x33]
      %v268 = vld [vmem:[%s3] sm:$0xff]
      %v269 = vld [vmem:[%s3 + $0x8] sm:$0xff]
      %v270 = vld [vmem:[%s3 + $0x10] sm:$0xff]
      %v271 = vld [vmem:[%s3 + $0x18] sm:$0xff]
      %273 = vset.pattern.permute.xlu0 0
      %274 = vperm.xlu0 %273, %v268
      %v275 = vpop.permute.xlu0 %274
      %278 = vset.pattern.permute.xlu0 0
      %279 = vperm.xlu0 %278, %v269
      %v280 = vpop.permute.xlu0 %279
      %283 = vset.pattern.permute.xlu0 0
      %284 = vperm.xlu0 %283, %v270
      %v285 = vpop.permute.xlu0 %284
      %288 = vset.pattern.permute.xlu0 0
      %289 = vperm.xlu0 %288, %v271
      %v290 = vpop.permute.xlu0 %289
      %v296 = vunpack.c.l.b16 %v259
      %v297 = vunpack.c.l.b16 %v260
      %v298 = vunpack.c.l.b16 %v261
      %v299 = vunpack.c.l.b16 %v262
      %v300 = vpack.c.b16 %v297, %v296
      %v301 = vpack.c.b16 %v299, %v298
      %v307 = vunpack.c.l.b16 %v263
      %v308 = vunpack.c.h.b16 %v263
      %v309 = vunpack.c.l.b16 %v264
      %v310 = vunpack.c.h.b16 %v264
      %v311 = vunpack.c.l.b16 %v265
      %v312 = vunpack.c.h.b16 %v265
      %v313 = vunpack.c.l.b16 %v266
      %v314 = vunpack.c.h.b16 %v266
      %v315 = vunpack.c.l.b16 %v267
      %v316 = vunpack.c.h.b16 %v267
      %v317 = vpack.c.b16 %v309, %v307
      %v318 = vpack.c.b16 %v310, %v308
      %v319 = vpack.c.b16 %v313, %v311
      %v320 = vpack.c.b16 %v314, %v312
      %v321 = vpack.c.b16 %v315, %v315
      %v322 = vpack.c.b16 %v316, %v316
      %vm327 = vcmask 293888
      %v329 = vsel %vm327, %v300, 0
      %v332 = vsel %vm327, %v301, 0
      %vm334 = vcmask 1041408
      %v336 = vsel %vm334, %v321, 0
      %v339 = vsel %vm334, %v322, 0
      %341 = vmatprep.subr.bf16.mxu0 0
      %342 = vmatpush1.bf16.msra.mxu0 0
      %343 = vmatprep.subr.bf16.mxu0 0
      %344 = vmatpush1.bf16.msra.mxu0 0
      %345 = vmatprep.subr.bf16.mxu0 0
      %346 = vmatpush1.bf16.msra.mxu0 0
      %347 = vmatprep.subr.bf16.mxu0 0
      %348 = vmatpush1.bf16.msra.mxu0 0
      %349 = vmatprep.subr.bf16.mxu0 0
      %350 = vmatpush1.bf16.msra.mxu0 0
      %351 = vmatprep.subr.bf16.mxu0 %v339
      %352 = vmatpush1.bf16.msra.mxu0 %v336
      %353 = vmatprep.subr.bf16.mxu0 %v320
      %354 = vmatpush1.bf16.msra.mxu0 %v319
      %355 = vmatprep.subr.bf16.mxu0 %v318
      %356 = vmatpush1.bf16.msra.mxu0 %v317
      %357 = vmatprep.subr.bf16.mxu0 0
      %358 = vmatpush2.bf16.msra.mxu0 0
      %359 = vmatprep.subr.bf16.mxu0 0
      %360 = vmatpush2.bf16.msra.mxu0 0
      %361 = vmatprep.subr.bf16.mxu0 0
      %362 = vmatpush2.bf16.msra.mxu0 0
      %363 = vmatprep.subr.bf16.mxu0 0
      %364 = vmatpush2.bf16.msra.mxu0 0
      %365 = vmatprep.subr.bf16.mxu0 0
      %366 = vmatpush2.bf16.msra.mxu0 0
      %367 = vmatprep.subr.bf16.mxu0 0
      %368 = vmatpush2.bf16.msra.mxu0 0
      %369 = vmatprep.subr.bf16.mxu0 0
      %370 = vmatpush2.bf16.msra.mxu0 0
      %371 = vmatprep.subr.bf16.mxu0 0
      %372 = vmatpush2.bf16.msra.mxu0 0
      %373 = vmatprep.mubr.bf16.mxu0 0
      %374 = vmatmul.mubr.bf16.gmra.mxu0 %v329
      %v375 = vpop.f32.mrf.mxu0
      %v376 = vadd.f32 %v275, %v375
      %v377 = vpop.f32.mrf.mxu0
      %v378 = vadd.f32 %v275, %v377
      %v379 = vpop.f32.mrf.mxu0
      %v380 = vadd.f32 %v280, %v379
      %v381 = vpop.f32.mrf.mxu0
      %v382 = vadd.f32 %v280, %v381
      %383 = vmatprep.mubr.bf16.mxu0 0
      %384 = vmatmul.mubr.bf16.gmra.mxu0 %v332
      %v385 = vpop.f32.mrf.mxu0
      %v386 = vadd.f32 %v285, %v385
      %v387 = vpop.f32.mrf.mxu0
      %v388 = vadd.f32 %v285, %v387
      %v389 = vpop.f32.mrf.mxu0
      %v390 = vadd.f32 %v290, %v389
      %v391 = vpop.f32.mrf.mxu0
      %v392 = vadd.f32 %v290, %v391
      %393 = vdwg.mxu0
      %v394 = vxor.u32 %v376, 2147483648
      %v395 = vxor.u32 %v378, 2147483648
      %v396 = vmul.f32 %v394, 1.442695
      %v397 = vpow.pop %v396
      %v398 = vmul.f32 %v395, 1.442695
      %v399 = vpow.pop %v398
      %v400 = vadd.f32 %v397, 1.0
      %v401 = vadd.f32 %v399, 1.0
      %v402 = vrcp.pop %v400
      %v403 = vmul.f32 1.0, %v402
      %v404 = vrcp.pop %v401
      %v405 = vmul.f32 1.0, %v404
      %v406 = vxor.u32 %v380, 2147483648
      %v407 = vxor.u32 %v382, 2147483648
      %v408 = vmul.f32 %v406, 1.442695
      %v409 = vpow.pop %v408
      %v410 = vmul.f32 %v407, 1.442695
      %v411 = vpow.pop %v410
      %v412 = vadd.f32 %v409, 1.0
      %v413 = vadd.f32 %v411, 1.0
      %v414 = vrcp.pop %v412
      %v415 = vmul.f32 1.0, %v414
      %v416 = vrcp.pop %v413
      %v417 = vmul.f32 1.0, %v416
      %v418 = vxor.u32 %v386, 2147483648
      %v419 = vxor.u32 %v388, 2147483648
      %v420 = vmul.f32 %v418, 1.442695
      %v421 = vpow.pop %v420
      %v422 = vmul.f32 %v419, 1.442695
      %v423 = vpow.pop %v422
      %v424 = vadd.f32 %v421, 1.0
      %v425 = vadd.f32 %v423, 1.0
      %v426 = vrcp.pop %v424
      %v427 = vmul.f32 1.0, %v426
      %v428 = vrcp.pop %v425
      %v429 = vmul.f32 1.0, %v428
      %v430 = vtanh.pop %v390
      %v431 = vtanh.pop %v392
      %v432 = vld [vmem:[%s247] sm:$0xff]
      %v433 = vld [vmem:[%s247 + $0x8] sm:$0xff]
      %v434 = vmul.f32 %v403, %v432
      %v435 = vmul.f32 %v405, %v433
      %v436 = vmul.f32 %v415, %v430
      %v437 = vmul.f32 %v417, %v431
      %v438 = vadd.f32 %v434, %v436
      %v439 = vadd.f32 %v435, %v437
      %v440 = vtanh.pop %v438
      %v441 = vtanh.pop %v439
      %v442 = vmul.f32 %v427, %v440
      %v443 = vmul.f32 %v429, %v441
      %444 = vst [vmem:[%s257] sm:$0xff] %v438
      %445 = vst [vmem:[%s257 + $0x8] sm:$0xff] %v439
      %446 = vst [vmem:[%s252] sm:$0xff] %v442
      %447 = vst [vmem:[%s252 + $0x8] sm:$0xff] %v443
      %p448 = scmp.lt.s32.totalorder %s17, 1
      %s449 = scalar_select %p448, %s17, 1
      %s450 = smul.addr %s449, 2
      %s451 = smul.addr %s450, 8
      %s452 = scalar_lea.vmem %s4, %s451
      %p453 = scmp.lt.s32.totalorder %s17, 1
      %s454 = scalar_select %p453, %s17, 1
      %s455 = smul.addr %s454, 2
      %s456 = smul.addr %s455, 8
      %s457 = scalar_lea.vmem %s5, %s456
      // Predicated region
      $region37: #{conv2d_lstm_cell.1} parent=35 // pred_check
        %p458 = pneg %p129
      $region38: #{conv2d_lstm_cell.1} parent=35 // pred_check_branch
        %460 = sbr.rel (%p458) target = $region40
      $region39: #{conv2d_lstm_cell.1} parent=35 // pred_region
        _
      $region40: #{conv2d_lstm_cell.1} parent=35 // pred_fallthru
        _
      // Predicated region
      $region41: #{conv2d_lstm_cell.1} parent=35 // pred_check
        %p461 = pneg %p155
      $region42: #{conv2d_lstm_cell.1} parent=35 // pred_check_branch
        %463 = sbr.rel (%p461) target = $region44
      $region43: #{conv2d_lstm_cell.1} parent=35 // pred_region
        _
      $region44: #{conv2d_lstm_cell.1} parent=35 // pred_fallthru
        _
    $region36: #{conv2d_lstm_cell.1} parent=5 // pred_fallthru
      _
    %p464 = scmp.le.s32.totalorder 2, %s12
    // Predicated region
    $region45: #{conv2d_lstm_cell.1} parent=5 // pred_check
      %p465 = pneg %p464
    $region46: #{conv2d_lstm_cell.1} parent=5 // pred_check_branch
      %467 = sbr.rel (%p465) target = $region48
    $region47: #{conv2d_lstm_cell.1} parent=5 // pred_region
      %s468 = ssub.s32 %s12, 2
      // Predicated region
      $region49: #{conv2d_lstm_cell.1} parent=47 // pred_check
        %p469 = pneg %p135
      $region50: #{conv2d_lstm_cell.1} parent=47 // pred_check_branch
        %471 = sbr.rel (%p469) target = $region52
      $region51: #{conv2d_lstm_cell.1} parent=47 // pred_region
        %p472 = scmp.lt.s32.totalorder %s18, 1
        %s473 = scalar_select %p472, %s18, 1
        %s474 = smul.addr %s473, 2
        %s475 = smul.addr %s474, 8
        %s476 = scalar_lea.vmem %s4, %s475
      $region52: #{conv2d_lstm_cell.1} parent=47 // pred_fallthru
        _
      // Predicated region
      $region53: #{conv2d_lstm_cell.1} parent=47 // pred_check
        %p477 = pneg %p161
      $region54: #{conv2d_lstm_cell.1} parent=47 // pred_check_branch
        %479 = sbr.rel (%p477) target = $region56
      $region55: #{conv2d_lstm_cell.1} parent=47 // pred_region
        %p480 = scmp.lt.s32.totalorder %s18, 1
        %s481 = scalar_select %p480, %s18, 1
        %s482 = smul.addr %s481, 2
        %s483 = smul.addr %s482, 8
        %s484 = scalar_lea.vmem %s5, %s483
      $region56: #{conv2d_lstm_cell.1} parent=47 // pred_fallthru
        _
    $region48: #{conv2d_lstm_cell.1} parent=5 // pred_fallthru
      _
  $region6: #{conv2d_lstm_cell.1} parent=0 // loop_footer
    %s16 = sadd.s32 1, %s12
  $region7: #{conv2d_lstm_cell.1} parent=0 // loop_footer_branch
    %11 = sbr.rel target = $region3
  $region8: #{conv2d_lstm_cell.1} parent=0 // loop_exit
    _

</llo_original>
